<compile_context>
chip_gen: v7x
topology: tpu7x:2x2x1
jax: 0.10.0
libtpu: 0.0.40
codegen_flags: <defaults>
</compile_context>

<pallas_src>
import functools

import jax
import jax.numpy as jnp
from jax import lax
from jax.experimental import pallas as pl
from jax.experimental.pallas import tpu as pltpu


_EPS = 1e-38      # matches the reference module: torch.sqrt(x + 1e-38)
_FT_CAP = 1 << 16  # max lanes per reduction chunk


def _vmem_budget():
    """(physical cap, per-pass working-set budget, vmem_limit_bytes)."""
    try:
        cap = int(getattr(pltpu.get_tpu_info(), "vmem_capacity_bytes", 0)) or (64 << 20)
    except Exception:
        cap = 64 << 20                      # assume the smallest (v7x) on failure
    budget = cap // 4                       # 16 MiB on v7x, 32 MiB on v5e/v6e
    limit = max(32 << 20, min(cap - (16 << 20), 2 * budget))
    return cap, budget, limit


def _multi_tensorcore():
    """True on chips whose TensorCores are driven by 'parallel' grid axes."""
    try:
        kind = jax.devices()[0].device_kind.lower()
    except Exception:
        return False
    return any(t in kind for t in ("v4", "v5p", "v7"))


def _pick_f_chunk(B, M, F, itemsize, budget_bytes):
    """Lane chunk for pass 1: always a multiple of 128 (or all of F if F <= 128)."""
    if F <= 128:
        return F
    # Per-step VMEM: double-buffered input tile + double-buffered fused-copy
    # tile + a few (M, Ft) f32 temporaries inside the kernel body.
    per_col = 4 * B * itemsize + 8 * M * 4
    ft_budget = max(128, (budget_bytes // per_col) // 128 * 128)
    ft_cap = max(128, (min(F, _FT_CAP) // 128) * 128)
    return min(ft_budget, ft_cap)


def _pick_b_chunk(B, row_bytes, budget_bytes, want_split=False):
    """Rows per assemble block: a multiple of 8 (or all of B)."""
    if B <= 8:
        return B
    bb = max(8, min(B, (budget_bytes // (2 * max(row_bytes, 1))) // 8 * 8))
    if want_split and B >= 16:          # keep >=2 grid steps for dual-core chips
        bb = min(bb, max(8, (B // 2) // 8 * 8))
    return bb


def _make_stddev_kernel(G, M, F, Ft, KP, NK, fused, overflow):
    need_mask = (F % Ft) != 0
    inv_g = 1.0 / G

    def kernel(*refs):
        if fused:
            x_ref, copy_ref, psum_ref = refs
        else:
            x_ref, psum_ref = refs
        p = pl.program_id(0)
        k = pl.program_id(1)
        chunk = p * KP + k

        @pl.when(k == 0)
        def _():
            psum_ref[...] = jnp.zeros_like(psum_ref)

        x = x_ref[...]                                   # (B, Ft), native dtype

        if fused:
            # Fused copy of x into the first-F columns of the final output.
            # Unconditional: on the (clamped) duplicate step of an odd chunk
            # count this rewrites the same block with identical data.
            copy_ref[...] = x

        def accumulate():
            # Group sum over contiguous sublane slabs (slab g, row m == sample
            # g*M + m).  Upcast slab-by-slab so no full f32 copy of the tile is
            # ever live (halves VMEM/vreg pressure for bf16 inputs).
            # TODO(synk): PyTorch accumulates in float64; TPU has no fast f64
            # path, so the two-pass centered variance is accumulated in f32.
            gsum = x[0:M, :].astype(jnp.float32)
            for g in range(1, G):
                gsum = gsum + x[g * M:(g + 1) * M, :].astype(jnp.float32)
            mean = gsum * inv_g                          # (M, Ft)
            sq = jnp.zeros_like(mean)
            for g in range(G):
                d = x[g * M:(g + 1) * M, :].astype(jnp.float32) - mean
                sq = sq + d * d
            std = jnp.sqrt(sq * inv_g + _EPS)            # (M, Ft)
            if need_mask:
                col = chunk * Ft + lax.broadcasted_iota(jnp.int32, std.shape, 1)
                std = jnp.where(col < F, std, 0.0)
            psum_ref[...] += jnp.sum(std, axis=1, keepdims=True)[None]

        if overflow:
            @pl.when(chunk < NK)        # skip the duplicated (clamped) step
            def _():
                accumulate()
        else:
            accumulate()

    return kernel


def _make_stat_write_kernel():
    def kernel(stat_ref, buf_hbm_ref, o_ref):
        # buf_hbm_ref is the pass-1 buffer aliased to this call's output HBM; it
        # already holds x in its first F columns, so only the lane-aligned stat
        # channel block is written here.
        del buf_hbm_ref
        bb, hw = o_ref.shape
        o_ref[...] = jnp.broadcast_to(stat_ref[...], (bb, hw)).astype(o_ref.dtype)
    return kernel


def _make_assemble_kernel(F, HW):
    # Unfused fallback (B == 1 or H*W not 128-aligned): copies x and writes the
    # stat channel in one pass over full (Bb, F+HW) rows.
    # TODO(synk): when F is not 128-aligned the stat store starts at a
    # misaligned lane offset and lowers to masked partial stores; the fused path
    # avoids this whenever H*W is lane-aligned.
    def kernel(stat_ref, x_ref, o_ref):
        bb = x_ref.shape[0]
        o_ref[:, pl.ds(0, F)] = x_ref[...]
        o_ref[:, pl.ds(F, HW)] = jnp.broadcast_to(
            stat_ref[...], (bb, HW)).astype(o_ref.dtype)
    return kernel


def minibatch_std(x, group_size=4, *, ft_override=None, _force_split=False):
    B, C, H, W = x.shape
    if B % group_size != 0 and B >= group_size:
        raise ValueError(
            "Batch Size(%d) must be divisible by (or smaller than) Group Size(%d)"
            % (B, group_size))
    G = min(group_size, B)
    M = B // G
    HW = H * W
    F = C * HW
    itemsize = jnp.dtype(x.dtype).itemsize

    cap, budget, vmem_limit = _vmem_budget()
    multi_tc = _multi_tensorcore()

    x2d = x.reshape(B, F)                               # free row-major view
    # Fused path: pass 1 also writes x into the output; needs a lane-aligned
    # stat-channel block, i.e. H*W a multiple of 128.
    fused = (B > 1) and (HW % 128 == 0)

    buf = None
    if B == 1:
        # torch path for batch==1 skips the std entirely: stat = mean(input).
        stat = jnp.mean(x2d.astype(jnp.float32), axis=1)          # (1,)
    else:
        Ft = ft_override or _pick_f_chunk(B, M, F, itemsize, budget)
        NK = pl.cdiv(F, Ft)
        split = (multi_tc or _force_split) and NK >= 2
        P = 2 if split else 1
        KP = pl.cdiv(NK, P)
        overflow = (P * KP != NK)

        if overflow:
            x_map = lambda p, k: (0, jnp.minimum(p * KP + k, NK - 1))
        else:
            x_map = lambda p, k: (0, p * KP + k)
        psum_spec = pl.BlockSpec((1, M, 1), lambda p, k: (p, 0, 0))

        kernel = _make_stddev_kernel(G, M, F, Ft, KP, NK, fused, overflow)
        rw = 2 if fused else 1
        cost = pl.CostEstimate(flops=int(6 * B * F), transcendentals=int(M * F),
                               bytes_accessed=int(rw * B * F * itemsize + P * M * 4))
        cparams = pltpu.CompilerParams(
            dimension_semantics=("parallel", "arbitrary"),
            vmem_limit_bytes=int(vmem_limit))

        if fused:
            buf, partials = pl.pallas_call(
                kernel,
                out_shape=(jax.ShapeDtypeStruct((B, F + HW), x.dtype),
                           jax.ShapeDtypeStruct((P, M, 1), jnp.float32)),
                grid=(P, KP),
                in_specs=[pl.BlockSpec((B, Ft), x_map)],
                out_specs=(pl.BlockSpec((B, Ft), x_map), psum_spec),
                compiler_params=cparams,
                cost_estimate=cost,
            )(x2d)
        else:
            partials = pl.pallas_call(
                kernel,
                out_shape=jax.ShapeDtypeStruct((P, M, 1), jnp.float32),
                grid=(P, KP),
                in_specs=[pl.BlockSpec((B, Ft), x_map)],
                out_specs=psum_spec,
                compiler_params=cparams,
                cost_estimate=cost,
            )(x2d)
        stat = (jnp.sum(partials, axis=0) * (1.0 / F)).reshape(M)   # (M,)

    # Per-row stat: output sample b uses stat[b % M] (torch .repeat order).
    stat_rows = jnp.tile(stat.reshape(-1, 1), (G, 1)).astype(jnp.float32)  # (B,1)

    if fused:
        # Pass 2 only fills the trailing H*W stat columns; the pass-1 buffer is
        # aliased to the output so the first F columns are never re-touched.
        Bb = _pick_b_chunk(B, HW * itemsize + 4, budget, want_split=multi_tc)
        out2d = pl.pallas_call(
            _make_stat_write_kernel(),
            out_shape=jax.ShapeDtypeStruct((B, F + HW), x.dtype),
            grid=(pl.cdiv(B, Bb),),
            in_specs=[pl.BlockSpec((Bb, 1), lambda i: (i, 0)),
                      pl.BlockSpec(memory_space=pl.ANY)],
            out_specs=pl.BlockSpec((Bb, HW), lambda i: (i, C)),
            input_output_aliases={1: 0},
            compiler_params=pltpu.CompilerParams(
                dimension_semantics=("parallel",)),
            cost_estimate=pl.CostEstimate(
                flops=int(B * HW), transcendentals=0,
                bytes_accessed=int(B * HW * itemsize + B * 4)),
        )(stat_rows, buf)
    else:
        row_bytes = (2 * F + HW) * itemsize + 4
        Bb = _pick_b_chunk(B, row_bytes, budget, want_split=multi_tc)
        asm_vmem = int(min(max(cap - (8 << 20), 32 << 20),
                           max(vmem_limit, 2 * Bb * row_bytes + (4 << 20))))
        out2d = pl.pallas_call(
            _make_assemble_kernel(F, HW),
            out_shape=jax.ShapeDtypeStruct((B, F + HW), x.dtype),
            grid=(pl.cdiv(B, Bb),),
            in_specs=[pl.BlockSpec((Bb, 1), lambda i: (i, 0)),
                      pl.BlockSpec((Bb, F), lambda i: (i, 0))],
            out_specs=pl.BlockSpec((Bb, F + HW), lambda i: (i, 0)),
            compiler_params=pltpu.CompilerParams(
                dimension_semantics=("parallel",),
                vmem_limit_bytes=asm_vmem),
            cost_estimate=pl.CostEstimate(
                flops=int(B * (F + HW)), transcendentals=0,
                bytes_accessed=int(B * (2 * F + HW) * itemsize + B * 4)),
        )(stat_rows, x2d)

    return out2d.reshape(B, C + 1, H, W)


def _reference(x, group_size=4):
    """Pure-JAX reference mirroring the PyTorch module (f32 accumulation)."""
    B, C, H, W = x.shape
    G = min(group_size, B)
    if B == 1:
        s = x.astype(jnp.float32)
    else:
        xg = x.astype(jnp.float32).reshape(G, B // G, C, H, W)
        m = jnp.mean(xg, axis=0, keepdims=True)
        v = jnp.mean((xg - m) ** 2, axis=0)
        s = jnp.sqrt(v + _EPS)
    stat = jnp.mean(s, axis=(1, 2, 3), keepdims=True)        # (M,1,1,1)
    stat = jnp.tile(stat, (G, 1, H, W)).astype(x.dtype)       # (B,1,H,W)
    return jnp.concatenate([x, stat], axis=1)


if __name__ == "__main__":
    def check(x, group_size=4, **kw):
        fn = jax.jit(functools.partial(minibatch_std, group_size=group_size, **kw))
        out = jax.block_until_ready(fn(x))
        ref = _reference(x, group_size=group_size)
        assert out.shape == ref.shape, (out.shape, ref.shape)
        err = float(jnp.max(jnp.abs(out.astype(jnp.float32) - ref.astype(jnp.float32))))
        assert err < 1e-4, err
        return out

    # Main shape: fused path (H*W lane-aligned), single F chunk.
    x = jax.random.normal(jax.random.PRNGKey(0), (8, 4, 16, 16), dtype=jnp.float32)
    check(x)

    # Small batch (< group_size) and H*W not 128-aligned -> unfused fallback.
    x2 = jax.random.normal(jax.random.PRNGKey(1), (2, 4, 8, 8), dtype=jnp.float32)
    check(x2)

    # Multi-chunk reduction with a masked edge chunk (F % Ft != 0), fused path.
    x3 = jax.random.normal(jax.random.PRNGKey(2), (8, 3, 16, 16), dtype=jnp.float32)
    check(x3, ft_override=512)

    # Odd chunk count with a forced 2-way core split (clamped duplicate step).
    x4 = jax.random.normal(jax.random.PRNGKey(3), (8, 5, 16, 16), dtype=jnp.float32)
    check(x4, ft_override=512, _force_split=True)

    print("KERNEL_OK")
</pallas_src>

<mosaic_0001>
module attributes {stable_mosaic.version = 11 : i64} {
  func.func @kernel(%arg0: i32, %arg1: i32, %arg2: memref<8x1024xf32, #tpu.memory_space<vmem>>, %arg3: memref<8x1024xf32, #tpu.memory_space<vmem>>, %arg4: memref<1x2x1xf32, #tpu.memory_space<vmem>>) attributes {dimension_semantics = [#tpu.dimension_semantics<parallel>, #tpu.dimension_semantics<arbitrary>], iteration_bounds = array<i64: 1, 1>, scalar_prefetch = 0 : i64, scratch_operands = 0 : i64, tpu.core_type = #tpu.core_type<tc>, window_params = [{transform_indices = @transform_0, window_bounds = array<i64: 8, 1024>}, {transform_indices = @transform_1, window_bounds = array<i64: 8, 1024>}, {transform_indices = @transform_2, window_bounds = array<i64: 1, 2, 1>}]} {
    %c0_i32 = arith.constant 0 : i32
    %0 = arith.cmpi eq, %arg1, %c0_i32 : i32
    %1 = arith.extui %0 : i1 to i32
    %c0_i32_0 = arith.constant 0 : i32
    %2 = arith.cmpi ne, %1, %c0_i32_0 : i32
    scf.if %2 {
      %cst_14 = arith.constant 0.000000e+00 : f32
      %42 = vector.broadcast %cst_14 : f32 to vector<1x2x1xf32>
      %c0_15 = arith.constant 0 : index
      %c0_16 = arith.constant 0 : index
      %c0_17 = arith.constant 0 : index
      %43 = vector.load %arg4[%c0_15, %c0_16, %c0_17] : memref<1x2x1xf32, #tpu.memory_space<vmem>>, vector<1x2x1xf32>
      tpu.vector_store %arg4[%c0_15, %c0_16, %c0_17], %42 {strides = array<i32>} : memref<1x2x1xf32, #tpu.memory_space<vmem>>, vector<1x2x1xf32>,
    } else {
    }
    %c0 = arith.constant 0 : index
    %c0_1 = arith.constant 0 : index
    %3 = vector.load %arg2[%c0, %c0_1] : memref<8x1024xf32, #tpu.memory_space<vmem>>, vector<8x1024xf32>
    %c0_2 = arith.constant 0 : index
    %c0_3 = arith.constant 0 : index
    %4 = vector.load %arg3[%c0_2, %c0_3] : memref<8x1024xf32, #tpu.memory_space<vmem>>, vector<8x1024xf32>
    tpu.vector_store %arg3[%c0_2, %c0_3], %3 {strides = array<i32>} : memref<8x1024xf32, #tpu.memory_space<vmem>>, vector<8x1024xf32>,
    %5 = vector.extract_strided_slice %3 {offsets = [0, 0], sizes = [2, 1024], strides = [1, 1]} : vector<8x1024xf32> to vector<2x1024xf32>
    %6 = vector.extract_strided_slice %3 {offsets = [2, 0], sizes = [2, 1024], strides = [1, 1]} : vector<8x1024xf32> to vector<2x1024xf32>
    %7 = arith.addf %5, %6 : vector<2x1024xf32>
    %8 = vector.extract_strided_slice %3 {offsets = [4, 0], sizes = [2, 1024], strides = [1, 1]} : vector<8x1024xf32> to vector<2x1024xf32>
    %9 = arith.addf %7, %8 : vector<2x1024xf32>
    %10 = vector.extract_strided_slice %3 {offsets = [6, 0], sizes = [2, 1024], strides = [1, 1]} : vector<8x1024xf32> to vector<2x1024xf32>
    %11 = arith.addf %9, %10 : vector<2x1024xf32>
    %cst = arith.constant 2.500000e-01 : f32
    %12 = vector.broadcast %cst : f32 to vector<2x1024xf32>
    %13 = arith.mulf %11, %12 : vector<2x1024xf32>
    %cst_4 = arith.constant 0.000000e+00 : f32
    %14 = vector.broadcast %cst_4 : f32 to vector<2x1024xf32>
    %15 = vector.extract_strided_slice %3 {offsets = [0, 0], sizes = [2, 1024], strides = [1, 1]} : vector<8x1024xf32> to vector<2x1024xf32>
    %16 = arith.subf %15, %13 : vector<2x1024xf32>
    %17 = arith.mulf %16, %16 : vector<2x1024xf32>
    %18 = arith.addf %14, %17 : vector<2x1024xf32>
    %19 = vector.extract_strided_slice %3 {offsets = [2, 0], sizes = [2, 1024], strides = [1, 1]} : vector<8x1024xf32> to vector<2x1024xf32>
    %20 = arith.subf %19, %13 : vector<2x1024xf32>
    %21 = arith.mulf %20, %20 : vector<2x1024xf32>
    %22 = arith.addf %18, %21 : vector<2x1024xf32>
    %23 = vector.extract_strided_slice %3 {offsets = [4, 0], sizes = [2, 1024], strides = [1, 1]} : vector<8x1024xf32> to vector<2x1024xf32>
    %24 = arith.subf %23, %13 : vector<2x1024xf32>
    %25 = arith.mulf %24, %24 : vector<2x1024xf32>
    %26 = arith.addf %22, %25 : vector<2x1024xf32>
    %27 = vector.extract_strided_slice %3 {offsets = [6, 0], sizes = [2, 1024], strides = [1, 1]} : vector<8x1024xf32> to vector<2x1024xf32>
    %28 = arith.subf %27, %13 : vector<2x1024xf32>
    %29 = arith.mulf %28, %28 : vector<2x1024xf32>
    %30 = arith.addf %26, %29 : vector<2x1024xf32>
    %cst_5 = arith.constant 2.500000e-01 : f32
    %31 = vector.broadcast %cst_5 : f32 to vector<2x1024xf32>
    %32 = arith.mulf %30, %31 : vector<2x1024xf32>
    %cst_6 = arith.constant 9.99999935E-39 : f32
    %33 = vector.broadcast %cst_6 : f32 to vector<2x1024xf32>
    %34 = arith.addf %32, %33 : vector<2x1024xf32>
    %35 = math.sqrt %34 : vector<2x1024xf32>
    %c0_7 = arith.constant 0 : index
    %c0_8 = arith.constant 0 : index
    %c0_9 = arith.constant 0 : index
    %36 = vector.load %arg4[%c0_7, %c0_8, %c0_9] : memref<1x2x1xf32, #tpu.memory_space<vmem>>, vector<1x2x1xf32>
    %cst_10 = arith.constant dense<0.000000e+00> : vector<2xf32>
    %37 = vector.multi_reduction <add>, %35, %cst_10 [1] : vector<2x1024xf32> to vector<2xf32>
    %38 = vector.shape_cast %37 : vector<2xf32> to vector<2x1xf32>
    %39 = vector.shape_cast %38 : vector<2x1xf32> to vector<1x2x1xf32>
    %40 = arith.addf %36, %39 : vector<1x2x1xf32>
    %c0_11 = arith.constant 0 : index
    %c0_12 = arith.constant 0 : index
    %c0_13 = arith.constant 0 : index
    %41 = vector.load %arg4[%c0_11, %c0_12, %c0_13] : memref<1x2x1xf32, #tpu.memory_space<vmem>>, vector<1x2x1xf32>
    tpu.vector_store %arg4[%c0_11, %c0_12, %c0_13], %40 {strides = array<i32>} : memref<1x2x1xf32, #tpu.memory_space<vmem>>, vector<1x2x1xf32>,
    return
  }
  func.func @transform_0(%arg0: i32, %arg1: i32) -> (i32, i32) {
    %c1_i32 = arith.constant 1 : i32
    %0 = arith.muli %arg0, %c1_i32 : i32
    %1 = arith.addi %0, %arg1 : i32
    %c0_i32 = arith.constant 0 : i32
    %c0_i32_0 = arith.constant 0 : i32
    return %c0_i32, %1 : i32, i32
  }
  func.func @transform_1(%arg0: i32, %arg1: i32) -> (i32, i32) {
    %c1_i32 = arith.constant 1 : i32
    %0 = arith.muli %arg0, %c1_i32 : i32
    %1 = arith.addi %0, %arg1 : i32
    %c0_i32 = arith.constant 0 : i32
    %c0_i32_0 = arith.constant 0 : i32
    return %c0_i32, %1 : i32, i32
  }
  func.func @transform_2(%arg0: i32, %arg1: i32) -> (i32, i32, i32) {
    %c0_i32 = arith.constant 0 : i32
    %c0_i32_0 = arith.constant 0 : i32
    %c0_i32_1 = arith.constant 0 : i32
    return %arg0, %c0_i32, %c0_i32_0 : i32, i32, i32
  }
}

module attributes {stable_mosaic.version = 11 : i64} {
  func.func @kernel(%arg0: i32, %arg1: memref<8x1xf32, #tpu.memory_space<vmem>>, %arg2: memref<8x1280xf32, #tpu.memory_space<any>>, %arg3: memref<8x256xf32, #tpu.memory_space<vmem>>) attributes {dimension_semantics = [#tpu.dimension_semantics<parallel>], iteration_bounds = array<i64: 1>, scalar_prefetch = 0 : i64, scratch_operands = 0 : i64, tpu.core_type = #tpu.core_type<tc>, window_params = [{transform_indices = @transform_0, window_bounds = array<i64: 8, 1>}, {}, {transform_indices = @transform_2, window_bounds = array<i64: 8, 256>}]} {
    %c0 = arith.constant 0 : index
    %c0_0 = arith.constant 0 : index
    %0 = vector.load %arg1[%c0, %c0_0] : memref<8x1xf32, #tpu.memory_space<vmem>>, vector<8x1xf32>
    %1 = vector.shape_cast %0 : vector<8x1xf32> to vector<8x1xf32>
    %2 = vector.broadcast %1 : vector<8x1xf32> to vector<8x256xf32>
    %c0_1 = arith.constant 0 : index
    %c0_2 = arith.constant 0 : index
    %3 = vector.load %arg3[%c0_1, %c0_2] : memref<8x256xf32, #tpu.memory_space<vmem>>, vector<8x256xf32>
    tpu.vector_store %arg3[%c0_1, %c0_2], %2 {strides = array<i32>} : memref<8x256xf32, #tpu.memory_space<vmem>>, vector<8x256xf32>,
    return
  }
  func.func @transform_0(%arg0: i32) -> (i32, i32) {
    %c0_i32 = arith.constant 0 : i32
    %c0_i32_0 = arith.constant 0 : i32
    return %arg0, %c0_i32 : i32, i32
  }
  func.func @transform_2(%arg0: i32) -> (i32, i32) {
    %c4_i32 = arith.constant 4 : i32
    %c0_i32 = arith.constant 0 : i32
    return %arg0, %c4_i32 : i32, i32
  }
}

</mosaic_0001>

<llo_original>
// kernel: minibatch_std.3
$region0: #{minibatch_std.3}
  #allocation0 [shape = 'u32[]', space=smem, size = 0x4, offset = 0x4, fixed_abs, tag = 'smem constant byte address 0x4 - core index']
  #allocation1 [shape = 'u32[144,128]{1,0:T(1,128)}', space=vmem, size = 0x12000, scoped, tag = 'internal scratch']
  %s0 = inlined_call_operand.vmem [shape: f32[8,1], index: 0, kind: input, shape index: {}]
  %s1 = inlined_call_operand.vmem [shape: f32[8,1280], index: 1, kind: input, shape index: {}, may-alias: {1,2}]
  %s2 = inlined_call_operand.vmem [shape: f32[8,1280], index: 2, kind: output, shape index: {}, may-alias: {1,2}]
  %s3 = sld [smem:[#allocation0]]
  $region14: #{minibatch_std.3} parent=0
    _
  %s5 = ssub.s32 1, %s3
  %s6 = scalar_select 0, %s5, %s3
  // Predicated region
  $region2: #{minibatch_std.3} parent=0 // pred_check
    _
  $region3: #{minibatch_std.3} parent=0 // pred_check_branch
    %8 = sbr.rel (0) target = $region5
  $region4: #{minibatch_std.3} parent=0 // pred_region
    _
  $region5: #{minibatch_std.3} parent=0 // pred_fallthru
    _
  %s9 = scalar_lea.vmem %s2, 64
  %s10 = scalar_lea.vmem %s2, 64
  %v11 = vld [vmem:[%s0] sm:$0xff]
  %13 = vset.pattern.permute.xlu0 0
  %14 = vperm.xlu0 %13, %v11
  %v15 = vpop.permute.xlu0 %14
  %17 = vst [vmem:[%s10] sm:$0xff] %v15
  %18 = vst [vmem:[%s10 + $0x8] sm:$0xff] %v15
  %s19 = scalar_lea.vmem %s2, 64
  // Predicated region
  $region6: #{minibatch_std.3} parent=0 // pred_check
    _
  $region7: #{minibatch_std.3} parent=0 // pred_check_branch
    %21 = sbr.rel (0) target = $region9
  $region8: #{minibatch_std.3} parent=0 // pred_region
    _
  $region9: #{minibatch_std.3} parent=0 // pred_fallthru
    _
  // Predicated region
  $region10: #{minibatch_std.3} parent=0 // pred_check
    _
  $region11: #{minibatch_std.3} parent=0 // pred_check_branch
    %23 = sbr.rel (0) target = $region13
  $region12: #{minibatch_std.3} parent=0 // pred_region
    %s24 = scalar_lea.vmem %s2, 64
  $region13: #{minibatch_std.3} parent=0 // pred_fallthru
    _

// kernel: minibatch_std.2
$region0: #{minibatch_std.2}
  #allocation0 [shape = 'u32[]', space=smem, size = 0x4, offset = 0x4, fixed_abs, tag = 'smem constant byte address 0x4 - core index']
  #allocation1 [shape = 'u32[144,128]{1,0:T(1,128)}', space=vmem, size = 0x12000, scoped, tag = 'internal scratch']
  %s0 = inlined_call_operand.vmem [shape: f32[8,1024], index: 0, kind: input, shape index: {}]
  %s1 = inlined_call_operand.vmem [shape: f32[8,1280], index: 1, kind: output, shape index: {0}]
  %s2 = inlined_call_operand.vmem [shape: f32[1,2,1], index: 2, kind: output, shape index: {1}]
  %3 = xla_tuple %s1, %s2
  %s4 = sld [smem:[#allocation0]]
  $region88: #{minibatch_std.2} parent=0
    _
  %s6 = ssub.s32 1, %s4
  %s7 = scalar_select 0, %s6, %s4
  $region1: #{minibatch_std.2} parent=0
    #allocation2 [shape = 'u8[32768]{0}', space=vmem, size = 0x8000, scoped, tag = 'output window, operand 0, single buffered']
    // Predicated region
    $region2: #{minibatch_std.2} parent=1 // pred_check
      _
    $region3: #{minibatch_std.2} parent=1 // pred_check_branch
      %9 = sbr.rel (0) target = $region5
    $region4: #{minibatch_std.2} parent=1 // pred_region
      %s10 = sadd.s32 0, 0
      %s11 = smul.u32 8, %s10
      %p12 = scmp.lt.s32.totalorder %s11, 7
      %s13 = scalar_select %p12, %s11, 7
      %s14 = smul.addr %s13, 8
      %s15 = scalar_lea.vmem %s0, %s14
      %s16 = sadd.s32 0, 0
      %s17 = smul.u32 8, %s16
    $region5: #{minibatch_std.2} parent=1 // pred_fallthru
      _
    %s18 = sadd.s32 0, 0
    %s19 = smul.u32 8, %s18
    %p20 = scmp.lt.s32.totalorder %s19, 7
    %s21 = scalar_select %p20, %s19, 7
    %s22 = smul.addr %s21, 8
    %s23 = scalar_lea.vmem %s0, %s22
    %s24 = sadd.s32 0, 0
    %s25 = smul.u32 8, %s24
    %p26 = scmp.lt.s32.totalorder %s25, 7
    %s27 = scalar_select %p26, %s25, 7
    %s28 = smul.addr %s27, 8
    %s29 = scalar_lea.vmem %s0, %s28
    %s30 = sadd.s32 0, 0
    %s31 = smul.u32 8, %s30
    %s32 = sadd.s32 0, 0
    %s33 = smul.u32 8, %s32
    %s34 = ssub.s32 10, %s33
    %p35 = scmp.lt.s32.totalorder %s34, 8
    %s36 = scalar_select %p35, %s34, 8
    %s37 = smul.u32 128, %s36
    %p38 = scmp.eq.s32.totalorder 0, 0
    // Predicated region
    $region6: #{minibatch_std.2} parent=1 // pred_check
      %p39 = pneg %p38
    $region7: #{minibatch_std.2} parent=1 // pred_check_branch
      %41 = sbr.rel (%p39) target = $region9
    $region8: #{minibatch_std.2} parent=1 // pred_region
      %vm42 = vcmask 1024
      %43 = vst.msk [vmem:[%s2] sm:$0x3] %vm42, 0.0
    $region9: #{minibatch_std.2} parent=1 // pred_fallthru
      _
    %v44 = vld [vmem:[%s29] sm:$0xff]
    %v45 = vld [vmem:[%s29 + $0x8] sm:$0xff]
    %v46 = vld [vmem:[%s29 + $0x10] sm:$0xff]
    %v47 = vld [vmem:[%s29 + $0x18] sm:$0xff]
    %v48 = vld [vmem:[%s29 + $0x20] sm:$0xff]
    %v49 = vld [vmem:[%s29 + $0x28] sm:$0xff]
    %v50 = vld [vmem:[%s29 + $0x30] sm:$0xff]
    %v51 = vld [vmem:[%s29 + $0x38] sm:$0xff]
    %52 = vst [vmem:[#allocation2] sm:$0xff] %v44
    %53 = vst [vmem:[#allocation2 + $0x8] sm:$0xff] %v45
    %54 = vst [vmem:[#allocation2 + $0x10] sm:$0xff] %v46
    %55 = vst [vmem:[#allocation2 + $0x18] sm:$0xff] %v47
    %56 = vst [vmem:[#allocation2 + $0x20] sm:$0xff] %v48
    %57 = vst [vmem:[#allocation2 + $0x28] sm:$0xff] %v49
    %58 = vst [vmem:[#allocation2 + $0x30] sm:$0xff] %v50
    %59 = vst [vmem:[#allocation2 + $0x38] sm:$0xff] %v51
    %v68 = vrot.slane %v44, 2
    %v69 = vrot.slane %v45, 2
    %v70 = vrot.slane %v46, 2
    %v71 = vrot.slane %v47, 2
    %v72 = vrot.slane %v48, 2
    %v73 = vrot.slane %v49, 2
    %v74 = vrot.slane %v50, 2
    %v75 = vrot.slane %v51, 2
    %v84 = vadd.f32 %v44, %v68
    %v85 = vadd.f32 %v45, %v69
    %v86 = vadd.f32 %v46, %v70
    %v87 = vadd.f32 %v47, %v71
    %v88 = vadd.f32 %v48, %v72
    %v89 = vadd.f32 %v49, %v73
    %v90 = vadd.f32 %v50, %v74
    %v91 = vadd.f32 %v51, %v75
    %v92 = vrot.slane %v44, 4
    %v93 = vrot.slane %v45, 4
    %v94 = vrot.slane %v46, 4
    %v95 = vrot.slane %v47, 4
    %v96 = vrot.slane %v48, 4
    %v97 = vrot.slane %v49, 4
    %v98 = vrot.slane %v50, 4
    %v99 = vrot.slane %v51, 4
    %v108 = vadd.f32 %v84, %v92
    %v109 = vadd.f32 %v85, %v93
    %v110 = vadd.f32 %v86, %v94
    %v111 = vadd.f32 %v87, %v95
    %v112 = vadd.f32 %v88, %v96
    %v113 = vadd.f32 %v89, %v97
    %v114 = vadd.f32 %v90, %v98
    %v115 = vadd.f32 %v91, %v99
    %v116 = vrot.slane %v44, 6
    %v117 = vrot.slane %v45, 6
    %v118 = vrot.slane %v46, 6
    %v119 = vrot.slane %v47, 6
    %v120 = vrot.slane %v48, 6
    %v121 = vrot.slane %v49, 6
    %v122 = vrot.slane %v50, 6
    %v123 = vrot.slane %v51, 6
    %v132 = vadd.f32 %v108, %v116
    %v133 = vadd.f32 %v109, %v117
    %v134 = vadd.f32 %v110, %v118
    %v135 = vadd.f32 %v111, %v119
    %v136 = vadd.f32 %v112, %v120
    %v137 = vadd.f32 %v113, %v121
    %v138 = vadd.f32 %v114, %v122
    %v139 = vadd.f32 %v115, %v123
    %v140 = vmul.f32 %v132, 0.25
    %v141 = vmul.f32 %v133, 0.25
    %v142 = vmul.f32 %v134, 0.25
    %v143 = vmul.f32 %v135, 0.25
    %v144 = vmul.f32 %v136, 0.25
    %v145 = vmul.f32 %v137, 0.25
    %v146 = vmul.f32 %v138, 0.25
    %v147 = vmul.f32 %v139, 0.25
    %v148 = vsub.f32 %v44, %v140
    %v149 = vsub.f32 %v45, %v141
    %v150 = vsub.f32 %v46, %v142
    %v151 = vsub.f32 %v47, %v143
    %v152 = vsub.f32 %v48, %v144
    %v153 = vsub.f32 %v49, %v145
    %v154 = vsub.f32 %v50, %v146
    %v155 = vsub.f32 %v51, %v147
    %v156 = vmul.f32 %v148, %v148
    %v157 = vmul.f32 %v149, %v149
    %v158 = vmul.f32 %v150, %v150
    %v159 = vmul.f32 %v151, %v151
    %v160 = vmul.f32 %v152, %v152
    %v161 = vmul.f32 %v153, %v153
    %v162 = vmul.f32 %v154, %v154
    %v163 = vmul.f32 %v155, %v155
    %v164 = vadd.f32 %v156, 0.0
    %v165 = vadd.f32 %v157, 0.0
    %v166 = vadd.f32 %v158, 0.0
    %v167 = vadd.f32 %v159, 0.0
    %v168 = vadd.f32 %v160, 0.0
    %v169 = vadd.f32 %v161, 0.0
    %v170 = vadd.f32 %v162, 0.0
    %v171 = vadd.f32 %v163, 0.0
    %v180 = vrot.slane %v140, 6
    %v181 = vrot.slane %v141, 6
    %v182 = vrot.slane %v142, 6
    %v183 = vrot.slane %v143, 6
    %v184 = vrot.slane %v144, 6
    %v185 = vrot.slane %v145, 6
    %v186 = vrot.slane %v146, 6
    %v187 = vrot.slane %v147, 6
    %v196 = vsub.f32 %v44, %v180
    %v197 = vsub.f32 %v45, %v181
    %v198 = vsub.f32 %v46, %v182
    %v199 = vsub.f32 %v47, %v183
    %v200 = vsub.f32 %v48, %v184
    %v201 = vsub.f32 %v49, %v185
    %v202 = vsub.f32 %v50, %v186
    %v203 = vsub.f32 %v51, %v187
    %v204 = vmul.f32 %v196, %v196
    %v205 = vmul.f32 %v197, %v197
    %v206 = vmul.f32 %v198, %v198
    %v207 = vmul.f32 %v199, %v199
    %v208 = vmul.f32 %v200, %v200
    %v209 = vmul.f32 %v201, %v201
    %v210 = vmul.f32 %v202, %v202
    %v211 = vmul.f32 %v203, %v203
    %v220 = vrot.slane %v204, 2
    %v221 = vrot.slane %v205, 2
    %v222 = vrot.slane %v206, 2
    %v223 = vrot.slane %v207, 2
    %v224 = vrot.slane %v208, 2
    %v225 = vrot.slane %v209, 2
    %v226 = vrot.slane %v210, 2
    %v227 = vrot.slane %v211, 2
    %v236 = vadd.f32 %v164, %v220
    %v237 = vadd.f32 %v165, %v221
    %v238 = vadd.f32 %v166, %v222
    %v239 = vadd.f32 %v167, %v223
    %v240 = vadd.f32 %v168, %v224
    %v241 = vadd.f32 %v169, %v225
    %v242 = vadd.f32 %v170, %v226
    %v243 = vadd.f32 %v171, %v227
    %v244 = vrot.slane %v140, 4
    %v245 = vrot.slane %v141, 4
    %v246 = vrot.slane %v142, 4
    %v247 = vrot.slane %v143, 4
    %v248 = vrot.slane %v144, 4
    %v249 = vrot.slane %v145, 4
    %v250 = vrot.slane %v146, 4
    %v251 = vrot.slane %v147, 4
    %v260 = vsub.f32 %v44, %v244
    %v261 = vsub.f32 %v45, %v245
    %v262 = vsub.f32 %v46, %v246
    %v263 = vsub.f32 %v47, %v247
    %v264 = vsub.f32 %v48, %v248
    %v265 = vsub.f32 %v49, %v249
    %v266 = vsub.f32 %v50, %v250
    %v267 = vsub.f32 %v51, %v251
    %v268 = vmul.f32 %v260, %v260
    %v269 = vmul.f32 %v261, %v261
    %v270 = vmul.f32 %v262, %v262
    %v271 = vmul.f32 %v263, %v263
    %v272 = vmul.f32 %v264, %v264
    %v273 = vmul.f32 %v265, %v265
    %v274 = vmul.f32 %v266, %v266
    %v275 = vmul.f32 %v267, %v267
    %v284 = vrot.slane %v268, 4
    %v285 = vrot.slane %v269, 4
    %v286 = vrot.slane %v270, 4
    %v287 = vrot.slane %v271, 4
    %v288 = vrot.slane %v272, 4
    %v289 = vrot.slane %v273, 4
    %v290 = vrot.slane %v274, 4
    %v291 = vrot.slane %v275, 4
    %v300 = vadd.f32 %v236, %v284
    %v301 = vadd.f32 %v237, %v285
    %v302 = vadd.f32 %v238, %v286
    %v303 = vadd.f32 %v239, %v287
    %v304 = vadd.f32 %v240, %v288
    %v305 = vadd.f32 %v241, %v289
    %v306 = vadd.f32 %v242, %v290
    %v307 = vadd.f32 %v243, %v291
    %v308 = vrot.slane %v140, 2
    %v309 = vrot.slane %v141, 2
    %v310 = vrot.slane %v142, 2
    %v311 = vrot.slane %v143, 2
    %v312 = vrot.slane %v144, 2
    %v313 = vrot.slane %v145, 2
    %v314 = vrot.slane %v146, 2
    %v315 = vrot.slane %v147, 2
    %v324 = vsub.f32 %v44, %v308
    %v325 = vsub.f32 %v45, %v309
    %v326 = vsub.f32 %v46, %v310
    %v327 = vsub.f32 %v47, %v311
    %v328 = vsub.f32 %v48, %v312
    %v329 = vsub.f32 %v49, %v313
    %v330 = vsub.f32 %v50, %v314
    %v331 = vsub.f32 %v51, %v315
    %v332 = vmul.f32 %v324, %v324
    %v333 = vmul.f32 %v325, %v325
    %v334 = vmul.f32 %v326, %v326
    %v335 = vmul.f32 %v327, %v327
    %v336 = vmul.f32 %v328, %v328
    %v337 = vmul.f32 %v329, %v329
    %v338 = vmul.f32 %v330, %v330
    %v339 = vmul.f32 %v331, %v331
    %v348 = vrot.slane %v332, 6
    %v349 = vrot.slane %v333, 6
    %v350 = vrot.slane %v334, 6
    %v351 = vrot.slane %v335, 6
    %v352 = vrot.slane %v336, 6
    %v353 = vrot.slane %v337, 6
    %v354 = vrot.slane %v338, 6
    %v355 = vrot.slane %v339, 6
    %v364 = vadd.f32 %v300, %v348
    %v365 = vadd.f32 %v301, %v349
    %v366 = vadd.f32 %v302, %v350
    %v367 = vadd.f32 %v303, %v351
    %v368 = vadd.f32 %v304, %v352
    %v369 = vadd.f32 %v305, %v353
    %v370 = vadd.f32 %v306, %v354
    %v371 = vadd.f32 %v307, %v355
    %v372 = vmul.f32 %v364, 0.25
    %v373 = vmul.f32 %v365, 0.25
    %v374 = vmul.f32 %v366, 0.25
    %v375 = vmul.f32 %v367, 0.25
    %v376 = vmul.f32 %v368, 0.25
    %v377 = vmul.f32 %v369, 0.25
    %v378 = vmul.f32 %v370, 0.25
    %v379 = vmul.f32 %v371, 0.25
    %v380 = vadd.f32 %v372, 1e-38
    %v381 = vadd.f32 %v373, 1e-38
    %v382 = vadd.f32 %v374, 1e-38
    %v383 = vadd.f32 %v375, 1e-38
    %v384 = vadd.f32 %v376, 1e-38
    %v385 = vadd.f32 %v377, 1e-38
    %v386 = vadd.f32 %v378, 1e-38
    %v387 = vadd.f32 %v379, 1e-38
    %v388 = vrsqrt.pop %v380
    %v389 = vmul.f32 %v380, %v388
    %vm390 = vcmp.eq.f32.partialorder %v380, inf
    %v391 = vsel %vm390, %v380, %v389
    %vm392 = vcmp.eq.f32.partialorder %v380, 0.0
    %v393 = vand.u32 %v380, 2147483648
    %v394 = vsel %vm392, %v393, %v391
    %v395 = vrsqrt.pop %v381
    %v396 = vmul.f32 %v381, %v395
    %vm397 = vcmp.eq.f32.partialorder %v381, inf
    %v398 = vsel %vm397, %v381, %v396
    %vm399 = vcmp.eq.f32.partialorder %v381, 0.0
    %v400 = vand.u32 %v381, 2147483648
    %v401 = vsel %vm399, %v400, %v398
    %v402 = vrsqrt.pop %v382
    %v403 = vmul.f32 %v382, %v402
    %vm404 = vcmp.eq.f32.partialorder %v382, inf
    %v405 = vsel %vm404, %v382, %v403
    %vm406 = vcmp.eq.f32.partialorder %v382, 0.0
    %v407 = vand.u32 %v382, 2147483648
    %v408 = vsel %vm406, %v407, %v405
    %v409 = vrsqrt.pop %v383
    %v410 = vmul.f32 %v383, %v409
    %vm411 = vcmp.eq.f32.partialorder %v383, inf
    %v412 = vsel %vm411, %v383, %v410
    %vm413 = vcmp.eq.f32.partialorder %v383, 0.0
    %v414 = vand.u32 %v383, 2147483648
    %v415 = vsel %vm413, %v414, %v412
    %v416 = vrsqrt.pop %v384
    %v417 = vmul.f32 %v384, %v416
    %vm418 = vcmp.eq.f32.partialorder %v384, inf
    %v419 = vsel %vm418, %v384, %v417
    %vm420 = vcmp.eq.f32.partialorder %v384, 0.0
    %v421 = vand.u32 %v384, 2147483648
    %v422 = vsel %vm420, %v421, %v419
    %v423 = vrsqrt.pop %v385
    %v424 = vmul.f32 %v385, %v423
    %vm425 = vcmp.eq.f32.partialorder %v385, inf
    %v426 = vsel %vm425, %v385, %v424
    %vm427 = vcmp.eq.f32.partialorder %v385, 0.0
    %v428 = vand.u32 %v385, 2147483648
    %v429 = vsel %vm427, %v428, %v426
    %v430 = vrsqrt.pop %v386
    %v431 = vmul.f32 %v386, %v430
    %vm432 = vcmp.eq.f32.partialorder %v386, inf
    %v433 = vsel %vm432, %v386, %v431
    %vm434 = vcmp.eq.f32.partialorder %v386, 0.0
    %v435 = vand.u32 %v386, 2147483648
    %v436 = vsel %vm434, %v435, %v433
    %v437 = vrsqrt.pop %v387
    %v438 = vmul.f32 %v387, %v437
    %vm439 = vcmp.eq.f32.partialorder %v387, inf
    %v440 = vsel %vm439, %v387, %v438
    %vm441 = vcmp.eq.f32.partialorder %v387, 0.0
    %v442 = vand.u32 %v387, 2147483648
    %v443 = vsel %vm441, %v442, %v440
    %v444 = vld [vmem:[%s2] sm:$0x3]
    %vm445 = vcmask 1041408
    %v446 = vsel %vm445, %v394, 0.0
    %v447 = vsel %vm445, %v401, 0.0
    %v448 = vadd.f32 %v446, %v447
    %v449 = vsel %vm445, %v408, 0.0
    %v450 = vadd.f32 %v448, %v449
    %v451 = vsel %vm445, %v415, 0.0
    %v452 = vadd.f32 %v450, %v451
    %v453 = vsel %vm445, %v422, 0.0
    %v454 = vadd.f32 %v452, %v453
    %v455 = vsel %vm445, %v429, 0.0
    %v456 = vadd.f32 %v454, %v455
    %v457 = vsel %vm445, %v436, 0.0
    %v458 = vadd.f32 %v456, %v457
    %v459 = vsel %vm445, %v443, 0.0
    %v460 = vadd.f32 %v458, %v459
    %461 = vadd.xlane.f32.xlu0 %v460
    %v462 = vpop.xlane.xlu0 %461
    %v463 = vadd.f32 %v444, %v462
    %vm464 = vcmask 1024
    %465 = vst.msk [vmem:[%s2] sm:$0x3] %vm464, %v463
    // Predicated region
    $region10: #{minibatch_std.2} parent=1 // pred_check
      _
    $region11: #{minibatch_std.2} parent=1 // pred_check_branch
      %467 = sbr.rel (0) target = $region13
    $region12: #{minibatch_std.2} parent=1 // pred_region
      %s468 = sadd.s32 0, 0
      %s469 = smul.u32 8, %s468
      %s470 = ssub.s32 10, %s469
      %p471 = scmp.lt.s32.totalorder %s470, 8
      %s472 = scalar_select %p471, %s470, 8
      %s473 = smul.u32 128, %s472
      %p474 = scmp.ne.s32.totalorder 0, %s473
      %s475 = smul.addr %s469, 8
      %s476 = scalar_lea.vmem %s1, %s475
      %s477 = smul.u32 %s472, 8
      // Predicated region
      $region14: #{minibatch_std.2} parent=12 // pred_check
        %p478 = pneg %p474
      $region15: #{minibatch_std.2} parent=12 // pred_check_branch
        %480 = sbr.rel (%p478) target = $region17
      $region16: #{minibatch_std.2} parent=12 // pred_region
        %p481 = scmp.lt.u32.totalorder %s477, 8
        %p482 = pneg %p481
        // Predicated region
        $region18: #{minibatch_std.2} parent=16 // pred_check
          _
        $region19: #{minibatch_std.2} parent=16 // pred_check_branch
          %484 = sbr.rel (%p481) target = $region21
        $region20: #{minibatch_std.2} parent=16 // pred_region
          %s499 = sand.u32 %s477, 7
          %p500 = scmp.eq.s32.totalorder %s499, 0
          // Predicated region
          $region33: #{minibatch_std.2} parent=20 // pred_check
            %p501 = pneg %p500
          $region34: #{minibatch_std.2} parent=20 // pred_check_branch
            %503 = sbr.rel (%p501) target = $region36
          $region35: #{minibatch_std.2} parent=20 // pred_region
            %s504 = sshrl.u32 %s477, 3
            %s505 = sshrl.u32 %s504, 6
            // While loop
            $region37: #{minibatch_std.2} parent=35 // loop_pre_header
              _
            $region38: #{minibatch_std.2} parent=35 // loop_header
              %s509 = sphi 0, %s511
              %p510 = scmp.ge.s32.totalorder %s509, %s505
              %s514 = sphi 0, %s647
              %s515 = sphi [#allocation2], %s650
              %s516 = sphi %s476, %s651
            $region39: #{minibatch_std.2} parent=35 // loop_header_branch
              %513 = sbr.rel (%p510) target = $region43
            $region40: #{minibatch_std.2} parent=35 // loop_body
              %v517 = vld [vmem:[%s515] sm:$0xff]
              %518 = vst [vmem:[%s516] sm:$0xff] %v517
              %v519 = vld [vmem:[%s515 + $0x8] sm:$0xff]
              %520 = vst [vmem:[%s516 + $0x8] sm:$0xff] %v519
              %v521 = vld [vmem:[%s515 + $0x10] sm:$0xff]
              %522 = vst [vmem:[%s516 + $0x10] sm:$0xff] %v521
              %v523 = vld [vmem:[%s515 + $0x18] sm:$0xff]
              %524 = vst [vmem:[%s516 + $0x18] sm:$0xff] %v523
              %v525 = vld [vmem:[%s515 + $0x20] sm:$0xff]
              %526 = vst [vmem:[%s516 + $0x20] sm:$0xff] %v525
              %v527 = vld [vmem:[%s515 + $0x28] sm:$0xff]
              %528 = vst [vmem:[%s516 + $0x28] sm:$0xff] %v527
              %v529 = vld [vmem:[%s515 + $0x30] sm:$0xff]
              %530 = vst [vmem:[%s516 + $0x30] sm:$0xff] %v529
              %v531 = vld [vmem:[%s515 + $0x38] sm:$0xff]
              %532 = vst [vmem:[%s516 + $0x38] sm:$0xff] %v531
              %v533 = vld [vmem:[%s515 + $0x40] sm:$0xff]
              %534 = vst [vmem:[%s516 + $0x40] sm:$0xff] %v533
              %v535 = vld [vmem:[%s515 + $0x48] sm:$0xff]
              %536 = vst [vmem:[%s516 + $0x48] sm:$0xff] %v535
              %v537 = vld [vmem:[%s515 + $0x50] sm:$0xff]
              %538 = vst [vmem:[%s516 + $0x50] sm:$0xff] %v537
              %v539 = vld [vmem:[%s515 + $0x58] sm:$0xff]
              %540 = vst [vmem:[%s516 + $0x58] sm:$0xff] %v539
              %v541 = vld [vmem:[%s515 + $0x60] sm:$0xff]
              %542 = vst [vmem:[%s516 + $0x60] sm:$0xff] %v541
              %v543 = vld [vmem:[%s515 + $0x68] sm:$0xff]
              %544 = vst [vmem:[%s516 + $0x68] sm:$0xff] %v543
              %v545 = vld [vmem:[%s515 + $0x70] sm:$0xff]
              %546 = vst [vmem:[%s516 + $0x70] sm:$0xff] %v545
              %v547 = vld [vmem:[%s515 + $0x78] sm:$0xff]
              %548 = vst [vmem:[%s516 + $0x78] sm:$0xff] %v547
              %v549 = vld [vmem:[%s515 + $0x80] sm:$0xff]
              %550 = vst [vmem:[%s516 + $0x80] sm:$0xff] %v549
              %v551 = vld [vmem:[%s515 + $0x88] sm:$0xff]
              %552 = vst [vmem:[%s516 + $0x88] sm:$0xff] %v551
              %v553 = vld [vmem:[%s515 + $0x90] sm:$0xff]
              %554 = vst [vmem:[%s516 + $0x90] sm:$0xff] %v553
              %v555 = vld [vmem:[%s515 + $0x98] sm:$0xff]
              %556 = vst [vmem:[%s516 + $0x98] sm:$0xff] %v555
              %v557 = vld [vmem:[%s515 + $0xa0] sm:$0xff]
              %558 = vst [vmem:[%s516 + $0xa0] sm:$0xff] %v557
              %v559 = vld [vmem:[%s515 + $0xa8] sm:$0xff]
              %560 = vst [vmem:[%s516 + $0xa8] sm:$0xff] %v559
              %v561 = vld [vmem:[%s515 + $0xb0] sm:$0xff]
              %562 = vst [vmem:[%s516 + $0xb0] sm:$0xff] %v561
              %v563 = vld [vmem:[%s515 + $0xb8] sm:$0xff]
              %564 = vst [vmem:[%s516 + $0xb8] sm:$0xff] %v563
              %v565 = vld [vmem:[%s515 + $0xc0] sm:$0xff]
              %566 = vst [vmem:[%s516 + $0xc0] sm:$0xff] %v565
              %v567 = vld [vmem:[%s515 + $0xc8] sm:$0xff]
              %568 = vst [vmem:[%s516 + $0xc8] sm:$0xff] %v567
              %v569 = vld [vmem:[%s515 + $0xd0] sm:$0xff]
              %570 = vst [vmem:[%s516 + $0xd0] sm:$0xff] %v569
              %v571 = vld [vmem:[%s515 + $0xd8] sm:$0xff]
              %572 = vst [vmem:[%s516 + $0xd8] sm:$0xff] %v571
              %v573 = vld [vmem:[%s515 + $0xe0] sm:$0xff]
              %574 = vst [vmem:[%s516 + $0xe0] sm:$0xff] %v573
              %v575 = vld [vmem:[%s515 + $0xe8] sm:$0xff]
              %576 = vst [vmem:[%s516 + $0xe8] sm:$0xff] %v575
              %v577 = vld [vmem:[%s515 + $0xf0] sm:$0xff]
              %578 = vst [vmem:[%s516 + $0xf0] sm:$0xff] %v577
              %v579 = vld [vmem:[%s515 + $0xf8] sm:$0xff]
              %580 = vst [vmem:[%s516 + $0xf8] sm:$0xff] %v579
              %v581 = vld [vmem:[%s515 + $0x100] sm:$0xff]
              %582 = vst [vmem:[%s516 + $0x100] sm:$0xff] %v581
              %v583 = vld [vmem:[%s515 + $0x108] sm:$0xff]
              %584 = vst [vmem:[%s516 + $0x108] sm:$0xff] %v583
              %v585 = vld [vmem:[%s515 + $0x110] sm:$0xff]
              %586 = vst [vmem:[%s516 + $0x110] sm:$0xff] %v585
              %v587 = vld [vmem:[%s515 + $0x118] sm:$0xff]
              %588 = vst [vmem:[%s516 + $0x118] sm:$0xff] %v587
              %v589 = vld [vmem:[%s515 + $0x120] sm:$0xff]
              %590 = vst [vmem:[%s516 + $0x120] sm:$0xff] %v589
              %v591 = vld [vmem:[%s515 + $0x128] sm:$0xff]
              %592 = vst [vmem:[%s516 + $0x128] sm:$0xff] %v591
              %v593 = vld [vmem:[%s515 + $0x130] sm:$0xff]
              %594 = vst [vmem:[%s516 + $0x130] sm:$0xff] %v593
              %v595 = vld [vmem:[%s515 + $0x138] sm:$0xff]
              %596 = vst [vmem:[%s516 + $0x138] sm:$0xff] %v595
              %v597 = vld [vmem:[%s515 + $0x140] sm:$0xff]
              %598 = vst [vmem:[%s516 + $0x140] sm:$0xff] %v597
              %v599 = vld [vmem:[%s515 + $0x148] sm:$0xff]
              %600 = vst [vmem:[%s516 + $0x148] sm:$0xff] %v599
              %v601 = vld [vmem:[%s515 + $0x150] sm:$0xff]
              %602 = vst [vmem:[%s516 + $0x150] sm:$0xff] %v601
              %v603 = vld [vmem:[%s515 + $0x158] sm:$0xff]
              %604 = vst [vmem:[%s516 + $0x158] sm:$0xff] %v603
              %v605 = vld [vmem:[%s515 + $0x160] sm:$0xff]
              %606 = vst [vmem:[%s516 + $0x160] sm:$0xff] %v605
              %v607 = vld [vmem:[%s515 + $0x168] sm:$0xff]
              %608 = vst [vmem:[%s516 + $0x168] sm:$0xff] %v607
              %v609 = vld [vmem:[%s515 + $0x170] sm:$0xff]
              %610 = vst [vmem:[%s516 + $0x170] sm:$0xff] %v609
              %v611 = vld [vmem:[%s515 + $0x178] sm:$0xff]
              %612 = vst [vmem:[%s516 + $0x178] sm:$0xff] %v611
              %v613 = vld [vmem:[%s515 + $0x180] sm:$0xff]
              %614 = vst [vmem:[%s516 + $0x180] sm:$0xff] %v613
              %v615 = vld [vmem:[%s515 + $0x188] sm:$0xff]
              %616 = vst [vmem:[%s516 + $0x188] sm:$0xff] %v615
              %v617 = vld [vmem:[%s515 + $0x190] sm:$0xff]
              %618 = vst [vmem:[%s516 + $0x190] sm:$0xff] %v617
              %v619 = vld [vmem:[%s515 + $0x198] sm:$0xff]
              %620 = vst [vmem:[%s516 + $0x198] sm:$0xff] %v619
              %v621 = vld [vmem:[%s515 + $0x1a0] sm:$0xff]
              %622 = vst [vmem:[%s516 + $0x1a0] sm:$0xff] %v621
              %v623 = vld [vmem:[%s515 + $0x1a8] sm:$0xff]
              %624 = vst [vmem:[%s516 + $0x1a8] sm:$0xff] %v623
              %v625 = vld [vmem:[%s515 + $0x1b0] sm:$0xff]
              %626 = vst [vmem:[%s516 + $0x1b0] sm:$0xff] %v625
              %v627 = vld [vmem:[%s515 + $0x1b8] sm:$0xff]
              %628 = vst [vmem:[%s516 + $0x1b8] sm:$0xff] %v627
              %v629 = vld [vmem:[%s515 + $0x1c0] sm:$0xff]
              %630 = vst [vmem:[%s516 + $0x1c0] sm:$0xff] %v629
              %v631 = vld [vmem:[%s515 + $0x1c8] sm:$0xff]
              %632 = vst [vmem:[%s516 + $0x1c8] sm:$0xff] %v631
              %v633 = vld [vmem:[%s515 + $0x1d0] sm:$0xff]
              %634 = vst [vmem:[%s516 + $0x1d0] sm:$0xff] %v633
              %v635 = vld [vmem:[%s515 + $0x1d8] sm:$0xff]
              %636 = vst [vmem:[%s516 + $0x1d8] sm:$0xff] %v635
              %v637 = vld [vmem:[%s515 + $0x1e0] sm:$0xff]
              %638 = vst [vmem:[%s516 + $0x1e0] sm:$0xff] %v637
              %v639 = vld [vmem:[%s515 + $0x1e8] sm:$0xff]
              %640 = vst [vmem:[%s516 + $0x1e8] sm:$0xff] %v639
              %v641 = vld [vmem:[%s515 + $0x1f0] sm:$0xff]
              %642 = vst [vmem:[%s516 + $0x1f0] sm:$0xff] %v641
              %v643 = vld [vmem:[%s515 + $0x1f8] sm:$0xff]
              %644 = vst [vmem:[%s516 + $0x1f8] sm:$0xff] %v643
              %s645 = sadd.s32 1, %s514
              %p646 = scmp.ge.s32.totalorder %s645, %s505
              %s647 = scalar_select %p646, 0, %s645
              %s648 = smul.u32 %s647, 512
              %s649 = smul.u32 %s647, 512
              %s650 = scalar_lea.vmem [#allocation2], %s648
              %s651 = scalar_lea.vmem %s476, %s649
            $region41: #{minibatch_std.2} parent=35 // loop_footer
              %s511 = sadd.s32 %s509, 1
            $region42: #{minibatch_std.2} parent=35 // loop_footer_branch
              %508 = sbr.rel target = $region38
            $region43: #{minibatch_std.2} parent=35 // loop_exit
              _
            %s652 = sshrl.u32 %s504, 6
            %s653 = sand.u32 %s504, 63
            %s654 = smul.u32 %s652, 64
            %s655 = smul.u32 128, %s654
            %s656 = sshra.s32 %s655, 4
            %s657 = scalar_lea.vmem [#allocation2], %s656
            %s658 = smul.u32 128, %s654
            %s659 = sshra.s32 %s658, 4
            %s660 = scalar_lea.vmem %s476, %s659
            // While loop
            $region44: #{minibatch_std.2} parent=35 // loop_pre_header
              _
            $region45: #{minibatch_std.2} parent=35 // loop_header
              %s664 = sphi 0, %s666
              %p665 = scmp.ge.s32.totalorder %s664, %s653
              %s669 = sphi 0, %s676
              %s670 = sphi %s657, %s679
              %s671 = sphi %s660, %s680
            $region46: #{minibatch_std.2} parent=35 // loop_header_branch
              %668 = sbr.rel (%p665) target = $region50
            $region47: #{minibatch_std.2} parent=35 // loop_body
              %v672 = vld [vmem:[%s670] sm:$0xff]
              %673 = vst [vmem:[%s671] sm:$0xff] %v672
              %s674 = sadd.s32 1, %s669
              %p675 = scmp.ge.s32.totalorder %s674, %s653
              %s676 = scalar_select %p675, 0, %s674
              %s677 = smul.u32 %s676, 8
              %s678 = smul.u32 %s676, 8
              %s679 = scalar_lea.vmem %s657, %s677 [#allocation2]
              %s680 = scalar_lea.vmem %s660, %s678
            $region48: #{minibatch_std.2} parent=35 // loop_footer
              %s666 = sadd.s32 %s664, 1
            $region49: #{minibatch_std.2} parent=35 // loop_footer_branch
              %663 = sbr.rel target = $region45
            $region50: #{minibatch_std.2} parent=35 // loop_exit
              _
          $region36: #{minibatch_std.2} parent=20 // pred_fallthru
            _
          %p681 = pneg %p500
          // Predicated region
          $region51: #{minibatch_std.2} parent=20 // pred_check
            _
          $region52: #{minibatch_std.2} parent=20 // pred_check_branch
            %683 = sbr.rel (%p500) target = $region54
          $region53: #{minibatch_std.2} parent=20 // pred_region
            %s684 = sand.u32 %s477, 7
            %s685 = ssub.s32 %s477, %s684
            %s686 = scalar_lea.vmem [#allocation2], %s685
            %s687 = ssub.s32 %s477, %s684
            %s688 = scalar_lea.vmem %s476, %s687
            %s689 = sshrl.u32 %s477, 3
            %s690 = sshrl.u32 %s689, 6
            // While loop
            $region55: #{minibatch_std.2} parent=53 // loop_pre_header
              _
            $region56: #{minibatch_std.2} parent=53 // loop_header
              %s694 = sphi 0, %s696
              %p695 = scmp.ge.s32.totalorder %s694, %s690
              %s699 = sphi 0, %s832
              %s700 = sphi [#allocation2], %s835
              %s701 = sphi %s476, %s836
            $region57: #{minibatch_std.2} parent=53 // loop_header_branch
              %698 = sbr.rel (%p695) target = $region61
            $region58: #{minibatch_std.2} parent=53 // loop_body
              %v702 = vld [vmem:[%s700] sm:$0xff]
              %703 = vst [vmem:[%s701] sm:$0xff] %v702
              %v704 = vld [vmem:[%s700 + $0x8] sm:$0xff]
              %705 = vst [vmem:[%s701 + $0x8] sm:$0xff] %v704
              %v706 = vld [vmem:[%s700 + $0x10] sm:$0xff]
              %707 = vst [vmem:[%s701 + $0x10] sm:$0xff] %v706
              %v708 = vld [vmem:[%s700 + $0x18] sm:$0xff]
              %709 = vst [vmem:[%s701 + $0x18] sm:$0xff] %v708
              %v710 = vld [vmem:[%s700 + $0x20] sm:$0xff]
              %711 = vst [vmem:[%s701 + $0x20] sm:$0xff] %v710
              %v712 = vld [vmem:[%s700 + $0x28] sm:$0xff]
              %713 = vst [vmem:[%s701 + $0x28] sm:$0xff] %v712
              %v714 = vld [vmem:[%s700 + $0x30] sm:$0xff]
              %715 = vst [vmem:[%s701 + $0x30] sm:$0xff] %v714
              %v716 = vld [vmem:[%s700 + $0x38] sm:$0xff]
              %717 = vst [vmem:[%s701 + $0x38] sm:$0xff] %v716
              %v718 = vld [vmem:[%s700 + $0x40] sm:$0xff]
              %719 = vst [vmem:[%s701 + $0x40] sm:$0xff] %v718
              %v720 = vld [vmem:[%s700 + $0x48] sm:$0xff]
              %721 = vst [vmem:[%s701 + $0x48] sm:$0xff] %v720
              %v722 = vld [vmem:[%s700 + $0x50] sm:$0xff]
              %723 = vst [vmem:[%s701 + $0x50] sm:$0xff] %v722
              %v724 = vld [vmem:[%s700 + $0x58] sm:$0xff]
              %725 = vst [vmem:[%s701 + $0x58] sm:$0xff] %v724
              %v726 = vld [vmem:[%s700 + $0x60] sm:$0xff]
              %727 = vst [vmem:[%s701 + $0x60] sm:$0xff] %v726
              %v728 = vld [vmem:[%s700 + $0x68] sm:$0xff]
              %729 = vst [vmem:[%s701 + $0x68] sm:$0xff] %v728
              %v730 = vld [vmem:[%s700 + $0x70] sm:$0xff]
              %731 = vst [vmem:[%s701 + $0x70] sm:$0xff] %v730
              %v732 = vld [vmem:[%s700 + $0x78] sm:$0xff]
              %733 = vst [vmem:[%s701 + $0x78] sm:$0xff] %v732
              %v734 = vld [vmem:[%s700 + $0x80] sm:$0xff]
              %735 = vst [vmem:[%s701 + $0x80] sm:$0xff] %v734
              %v736 = vld [vmem:[%s700 + $0x88] sm:$0xff]
              %737 = vst [vmem:[%s701 + $0x88] sm:$0xff] %v736
              %v738 = vld [vmem:[%s700 + $0x90] sm:$0xff]
              %739 = vst [vmem:[%s701 + $0x90] sm:$0xff] %v738
              %v740 = vld [vmem:[%s700 + $0x98] sm:$0xff]
              %741 = vst [vmem:[%s701 + $0x98] sm:$0xff] %v740
              %v742 = vld [vmem:[%s700 + $0xa0] sm:$0xff]
              %743 = vst [vmem:[%s701 + $0xa0] sm:$0xff] %v742
              %v744 = vld [vmem:[%s700 + $0xa8] sm:$0xff]
              %745 = vst [vmem:[%s701 + $0xa8] sm:$0xff] %v744
              %v746 = vld [vmem:[%s700 + $0xb0] sm:$0xff]
              %747 = vst [vmem:[%s701 + $0xb0] sm:$0xff] %v746
              %v748 = vld [vmem:[%s700 + $0xb8] sm:$0xff]
              %749 = vst [vmem:[%s701 + $0xb8] sm:$0xff] %v748
              %v750 = vld [vmem:[%s700 + $0xc0] sm:$0xff]
              %751 = vst [vmem:[%s701 + $0xc0] sm:$0xff] %v750
              %v752 = vld [vmem:[%s700 + $0xc8] sm:$0xff]
              %753 = vst [vmem:[%s701 + $0xc8] sm:$0xff] %v752
              %v754 = vld [vmem:[%s700 + $0xd0] sm:$0xff]
              %755 = vst [vmem:[%s701 + $0xd0] sm:$0xff] %v754
              %v756 = vld [vmem:[%s700 + $0xd8] sm:$0xff]
              %757 = vst [vmem:[%s701 + $0xd8] sm:$0xff] %v756
              %v758 = vld [vmem:[%s700 + $0xe0] sm:$0xff]
              %759 = vst [vmem:[%s701 + $0xe0] sm:$0xff] %v758
              %v760 = vld [vmem:[%s700 + $0xe8] sm:$0xff]
              %761 = vst [vmem:[%s701 + $0xe8] sm:$0xff] %v760
              %v762 = vld [vmem:[%s700 + $0xf0] sm:$0xff]
              %763 = vst [vmem:[%s701 + $0xf0] sm:$0xff] %v762
              %v764 = vld [vmem:[%s700 + $0xf8] sm:$0xff]
              %765 = vst [vmem:[%s701 + $0xf8] sm:$0xff] %v764
              %v766 = vld [vmem:[%s700 + $0x100] sm:$0xff]
              %767 = vst [vmem:[%s701 + $0x100] sm:$0xff] %v766
              %v768 = vld [vmem:[%s700 + $0x108] sm:$0xff]
              %769 = vst [vmem:[%s701 + $0x108] sm:$0xff] %v768
              %v770 = vld [vmem:[%s700 + $0x110] sm:$0xff]
              %771 = vst [vmem:[%s701 + $0x110] sm:$0xff] %v770
              %v772 = vld [vmem:[%s700 + $0x118] sm:$0xff]
              %773 = vst [vmem:[%s701 + $0x118] sm:$0xff] %v772
              %v774 = vld [vmem:[%s700 + $0x120] sm:$0xff]
              %775 = vst [vmem:[%s701 + $0x120] sm:$0xff] %v774
              %v776 = vld [vmem:[%s700 + $0x128] sm:$0xff]
              %777 = vst [vmem:[%s701 + $0x128] sm:$0xff] %v776
              %v778 = vld [vmem:[%s700 + $0x130] sm:$0xff]
              %779 = vst [vmem:[%s701 + $0x130] sm:$0xff] %v778
              %v780 = vld [vmem:[%s700 + $0x138] sm:$0xff]
              %781 = vst [vmem:[%s701 + $0x138] sm:$0xff] %v780
              %v782 = vld [vmem:[%s700 + $0x140] sm:$0xff]
              %783 = vst [vmem:[%s701 + $0x140] sm:$0xff] %v782
              %v784 = vld [vmem:[%s700 + $0x148] sm:$0xff]
              %785 = vst [vmem:[%s701 + $0x148] sm:$0xff] %v784
              %v786 = vld [vmem:[%s700 + $0x150] sm:$0xff]
              %787 = vst [vmem:[%s701 + $0x150] sm:$0xff] %v786
              %v788 = vld [vmem:[%s700 + $0x158] sm:$0xff]
              %789 = vst [vmem:[%s701 + $0x158] sm:$0xff] %v788
              %v790 = vld [vmem:[%s700 + $0x160] sm:$0xff]
              %791 = vst [vmem:[%s701 + $0x160] sm:$0xff] %v790
              %v792 = vld [vmem:[%s700 + $0x168] sm:$0xff]
              %793 = vst [vmem:[%s701 + $0x168] sm:$0xff] %v792
              %v794 = vld [vmem:[%s700 + $0x170] sm:$0xff]
              %795 = vst [vmem:[%s701 + $0x170] sm:$0xff] %v794
              %v796 = vld [vmem:[%s700 + $0x178] sm:$0xff]
              %797 = vst [vmem:[%s701 + $0x178] sm:$0xff] %v796
              %v798 = vld [vmem:[%s700 + $0x180] sm:$0xff]
              %799 = vst [vmem:[%s701 + $0x180] sm:$0xff] %v798
              %v800 = vld [vmem:[%s700 + $0x188] sm:$0xff]
              %801 = vst [vmem:[%s701 + $0x188] sm:$0xff] %v800
              %v802 = vld [vmem:[%s700 + $0x190] sm:$0xff]
              %803 = vst [vmem:[%s701 + $0x190] sm:$0xff] %v802
              %v804 = vld [vmem:[%s700 + $0x198] sm:$0xff]
              %805 = vst [vmem:[%s701 + $0x198] sm:$0xff] %v804
              %v806 = vld [vmem:[%s700 + $0x1a0] sm:$0xff]
              %807 = vst [vmem:[%s701 + $0x1a0] sm:$0xff] %v806
              %v808 = vld [vmem:[%s700 + $0x1a8] sm:$0xff]
              %809 = vst [vmem:[%s701 + $0x1a8] sm:$0xff] %v808
              %v810 = vld [vmem:[%s700 + $0x1b0] sm:$0xff]
              %811 = vst [vmem:[%s701 + $0x1b0] sm:$0xff] %v810
              %v812 = vld [vmem:[%s700 + $0x1b8] sm:$0xff]
              %813 = vst [vmem:[%s701 + $0x1b8] sm:$0xff] %v812
              %v814 = vld [vmem:[%s700 + $0x1c0] sm:$0xff]
              %815 = vst [vmem:[%s701 + $0x1c0] sm:$0xff] %v814
              %v816 = vld [vmem:[%s700 + $0x1c8] sm:$0xff]
              %817 = vst [vmem:[%s701 + $0x1c8] sm:$0xff] %v816
              %v818 = vld [vmem:[%s700 + $0x1d0] sm:$0xff]
              %819 = vst [vmem:[%s701 + $0x1d0] sm:$0xff] %v818
              %v820 = vld [vmem:[%s700 + $0x1d8] sm:$0xff]
              %821 = vst [vmem:[%s701 + $0x1d8] sm:$0xff] %v820
              %v822 = vld [vmem:[%s700 + $0x1e0] sm:$0xff]
              %823 = vst [vmem:[%s701 + $0x1e0] sm:$0xff] %v822
              %v824 = vld [vmem:[%s700 + $0x1e8] sm:$0xff]
              %825 = vst [vmem:[%s701 + $0x1e8] sm:$0xff] %v824
              %v826 = vld [vmem:[%s700 + $0x1f0] sm:$0xff]
              %827 = vst [vmem:[%s701 + $0x1f0] sm:$0xff] %v826
              %v828 = vld [vmem:[%s700 + $0x1f8] sm:$0xff]
              %829 = vst [vmem:[%s701 + $0x1f8] sm:$0xff] %v828
              %s830 = sadd.s32 1, %s699
              %p831 = scmp.ge.s32.totalorder %s830, %s690
              %s832 = scalar_select %p831, 0, %s830
              %s833 = smul.u32 %s832, 512
              %s834 = smul.u32 %s832, 512
              %s835 = scalar_lea.vmem [#allocation2], %s833
              %s836 = scalar_lea.vmem %s476, %s834
            $region59: #{minibatch_std.2} parent=53 // loop_footer
              %s696 = sadd.s32 %s694, 1
            $region60: #{minibatch_std.2} parent=53 // loop_footer_branch
              %693 = sbr.rel target = $region56
            $region61: #{minibatch_std.2} parent=53 // loop_exit
              _
            %s837 = sshrl.u32 %s689, 6
            %s838 = sand.u32 %s689, 63
            %s839 = smul.u32 %s837, 64
            %s840 = smul.u32 128, %s839
            %s841 = sshra.s32 %s840, 4
            %s842 = scalar_lea.vmem [#allocation2], %s841
            %s843 = smul.u32 128, %s839
            %s844 = sshra.s32 %s843, 4
            %s845 = scalar_lea.vmem %s476, %s844
            // While loop
            $region62: #{minibatch_std.2} parent=53 // loop_pre_header
              _
            $region63: #{minibatch_std.2} parent=53 // loop_header
              %s849 = sphi 0, %s851
              %p850 = scmp.ge.s32.totalorder %s849, %s838
              %s854 = sphi 0, %s861
              %s855 = sphi %s842, %s864
              %s856 = sphi %s845, %s865
            $region64: #{minibatch_std.2} parent=53 // loop_header_branch
              %853 = sbr.rel (%p850) target = $region68
            $region65: #{minibatch_std.2} parent=53 // loop_body
              %v857 = vld [vmem:[%s855] sm:$0xff]
              %858 = vst [vmem:[%s856] sm:$0xff] %v857
              %s859 = sadd.s32 1, %s854
              %p860 = scmp.ge.s32.totalorder %s859, %s838
              %s861 = scalar_select %p860, 0, %s859
              %s862 = smul.u32 %s861, 8
              %s863 = smul.u32 %s861, 8
              %s864 = scalar_lea.vmem %s842, %s862 [#allocation2]
              %s865 = scalar_lea.vmem %s845, %s863
            $region66: #{minibatch_std.2} parent=53 // loop_footer
              %s851 = sadd.s32 %s849, 1
            $region67: #{minibatch_std.2} parent=53 // loop_footer_branch
              %848 = sbr.rel target = $region63
            $region68: #{minibatch_std.2} parent=53 // loop_exit
              _
            %s866 = sshllo.u32 0, %s684
            loop: start=0, step=1, limit=1
            $region69: #{minibatch_std.2} parent=53 // loop_pre_header
              _
            $region70: #{minibatch_std.2} parent=53 // loop_header
              %s868 = sphi 0, %s872
              %p869 = scmp.ge.s32.totalorder %s868, 1
              %s873 = sphi %s686, %s686
              %s874 = sphi %s688, %s688
            $region71: #{minibatch_std.2} parent=53 // loop_header_branch
              %871 = sbr.rel (%p869) target = $region75
            $region72: #{minibatch_std.2} parent=53 // loop_body
              %v875 = vld [vmem:[%s873] sm:%s866]
              %876 = vst [vmem:[%s874] sm:%s866] %v875
            $region73: #{minibatch_std.2} parent=53 // loop_footer
              %s872 = sadd.s32 1, %s868
            $region74: #{minibatch_std.2} parent=53 // loop_footer_branch
              %867 = sbr.rel target = $region70
            $region75: #{minibatch_std.2} parent=53 // loop_exit
              _
          $region54: #{minibatch_std.2} parent=20 // pred_fallthru
            _
        $region21: #{minibatch_std.2} parent=16 // pred_fallthru
          _
        // Predicated region
        $region22: #{minibatch_std.2} parent=16 // pred_check
          %p485 = pneg %p481
        $region23: #{minibatch_std.2} parent=16 // pred_check_branch
          %487 = sbr.rel (%p485) target = $region25
        $region24: #{minibatch_std.2} parent=16 // pred_region
          %s488 = sshllo.u32 0, %s477
          loop: start=0, step=1, limit=1
          $region26: #{minibatch_std.2} parent=24 // loop_pre_header
            _
          $region27: #{minibatch_std.2} parent=24 // loop_header
            %s490 = sphi 0, %s494
            %p491 = scmp.ge.s32.totalorder %s490, 1
            %s495 = sphi [#allocation2], [#allocation2]
            %s496 = sphi %s476, %s476
          $region28: #{minibatch_std.2} parent=24 // loop_header_branch
            %493 = sbr.rel (%p491) target = $region32
          $region29: #{minibatch_std.2} parent=24 // loop_body
            %v497 = vld [vmem:[%s495] sm:%s488]
            %498 = vst [vmem:[%s496] sm:%s488] %v497
          $region30: #{minibatch_std.2} parent=24 // loop_footer
            %s494 = sadd.s32 1, %s490
          $region31: #{minibatch_std.2} parent=24 // loop_footer_branch
            %489 = sbr.rel target = $region27
          $region32: #{minibatch_std.2} parent=24 // loop_exit
            _
        $region25: #{minibatch_std.2} parent=16 // pred_fallthru
          _
      $region17: #{minibatch_std.2} parent=12 // pred_fallthru
        _
      %877 = vnop
    $region13: #{minibatch_std.2} parent=1 // pred_fallthru
      _
    // Predicated region
    $region76: #{minibatch_std.2} parent=1 // pred_check
      _
    $region77: #{minibatch_std.2} parent=1 // pred_check_branch
      %879 = sbr.rel (0) target = $region79
    $region78: #{minibatch_std.2} parent=1 // pred_region
      _
    $region79: #{minibatch_std.2} parent=1 // pred_fallthru
      _
    // Predicated region
    $region80: #{minibatch_std.2} parent=1 // pred_check
      _
    $region81: #{minibatch_std.2} parent=1 // pred_check_branch
      %881 = sbr.rel (0) target = $region83
    $region82: #{minibatch_std.2} parent=1 // pred_region
      _
    $region83: #{minibatch_std.2} parent=1 // pred_fallthru
      _
    // Predicated region
    $region84: #{minibatch_std.2} parent=1 // pred_check
      _
    $region85: #{minibatch_std.2} parent=1 // pred_check_branch
      %883 = sbr.rel (0) target = $region87
    $region86: #{minibatch_std.2} parent=1 // pred_region
      _
    $region87: #{minibatch_std.2} parent=1 // pred_fallthru
      _

</llo_original>
